<compile_context>
chip_gen: v7x
topology: tpu7x:2x2x1
jax: 0.10.0
libtpu: 0.0.40
codegen_flags: <defaults>
</compile_context>

<pallas_src>
import jax
import jax.numpy as jnp
from jax.experimental import pallas as pl
from jax.experimental.pallas import tpu as pltpu


# ---------------------------------------------------------------------------
# pltpu.roll convention probe (expected: jnp.roll semantics).  Run once.
# ---------------------------------------------------------------------------
_ROLL_SIGN = None


def _probe_roll_sign():
    x = jnp.arange(8 * 128, dtype=jnp.float32).reshape(8, 128)

    def k(x_ref, o_ref):
        o_ref[...] = pltpu.roll(x_ref[...], 1, axis=1)

    y = pl.pallas_call(
        k, out_shape=jax.ShapeDtypeStruct((8, 128), jnp.float32))(x)
    if bool(jnp.array_equal(y, jnp.roll(x, 1, axis=1))):
        return -1        # shift_for(delta) = (-delta) % n  (jnp.roll semantics)
    if bool(jnp.array_equal(y, jnp.roll(x, -1, axis=1))):
        return 1         # flipped convention
    raise AssertionError("unexpected pltpu.roll convention")


def _get_roll_sign():
    global _ROLL_SIGN
    if _ROLL_SIGN is None:
        _ROLL_SIGN = _probe_roll_sign()
    return _ROLL_SIGN


# ---------------------------------------------------------------------------
# Fused CA kernel: theta / phi|g 1x1 convs + correlation + softmax + assemble
# + conv_out + residual, per batch element (channel-first, flat spatial).
# ---------------------------------------------------------------------------
def _make_ca_kernel(d, h, w, ci, mxu_dtype, ew_dtype, roll_sign):
    hw = h * w
    kw = 2 * d + 1
    f32 = jnp.float32
    approx_recip = ew_dtype != f32

    def shift_for(delta):
        # Want shifted[p] = src[p + delta] (wrap masked later).
        return (roll_sign * delta) % hw

    def lane_shift(v, delta):
        s = shift_for(delta)
        return pltpu.roll(v, s, axis=1) if s else v

    def kernel(x_ref, xr_ref, wq_ref, bq_ref, wkv_ref, bkv_ref, wo_ref, bo_ref,
               cmask_ref, rmask_ref, o_ref, logits_ref):
        # ---- 1x1 convs on the MXU (phi and g fused into one matmul) --------
        theta32 = jnp.dot(wq_ref[...], x_ref[0],
                          preferred_element_type=f32) + bq_ref[...]
        pg32 = jnp.dot(wkv_ref[...], xr_ref[0],
                       preferred_element_type=f32) + bkv_ref[...]

        theta = theta32.astype(ew_dtype)              # (Ci, HW)
        phi = pg32[0:ci, :].astype(ew_dtype)          # (Ci, HW)
        gval = pg32[ci:2 * ci, :].astype(ew_dtype)    # (Ci, HW)

        cmask = cmask_ref[...]                        # (kw, HW) per-dx col valid
        rmask = rmask_ref[...]                        # (kw, HW) per-dy row valid

        # ---- pass 1: correlation.  One roll per (dy,dx) (XLU), f32 channel
        #      reduce, one grouped masked (kw, HW) store per dy, running max.
        m_run = None
        for iy, dy in enumerate(range(-d, d + 1)):
            phi_dy = lane_shift(phi, dy * w)
            rows = []
            for dx in range(-d, d + 1):
                ph = lane_shift(phi_dy, dx)
                rows.append(jnp.sum((theta * ph).astype(f32),
                                    axis=0, keepdims=True))
            gmask = cmask * rmask[iy:iy + 1, :]
            group = jnp.concatenate(rows, axis=0) * gmask        # (kw, HW) f32
            logits_ref[iy] = group
            gmax = jnp.max(group, axis=0, keepdims=True)
            m_run = gmax if m_run is None else jnp.maximum(m_run, gmax)

        # ---- pass 2: exponentials + denominator (exp stored back, grouped) --
        denom = jnp.zeros((1, hw), f32)
        for iy in range(kw):
            e = jnp.exp(logits_ref[iy] - m_run)
            logits_ref[iy] = e
            denom = denom + jnp.sum(e, axis=0, keepdims=True)
        inv = pl.reciprocal(denom, approx=approx_recip)          # (1, HW)

        # ---- pass 3: assemble (rolls reused for g, 2 f32 accumulators) ------
        acc0 = jnp.zeros((ci, hw), f32)
        acc1 = jnp.zeros((ci, hw), f32)
        for iy, dy in enumerate(range(-d, d + 1)):
            g_dy = lane_shift(gval, dy * w)
            gmask = cmask * rmask[iy:iy + 1, :]
            wgroup = (logits_ref[iy] * inv * gmask).astype(ew_dtype)
            for ix, dx in enumerate(range(-d, d + 1)):
                gx = lane_shift(g_dy, dx)
                contrib = wgroup[ix:ix + 1, :] * gx
                if (iy * kw + ix) % 2 == 0:
                    acc0 = acc0 + contrib
                else:
                    acc1 = acc1 + contrib
        y = acc0 + acc1                                           # (Ci, HW) f32

        # ---- conv_out + residual fused on the MXU ---------------------------
        out = (x_ref[0].astype(f32)
               + jnp.dot(wo_ref[...], y.astype(mxu_dtype),
                         preferred_element_type=f32)
               + bo_ref[...])
        o_ref[0] = out.astype(o_ref.dtype)

    return kernel


def ca_block(x, xref, p, d, mxu_dtype=jnp.float32, ew_dtype=jnp.float32):
    """One CA block forward (NCHW in / NCHW out).

    mxu_dtype: operand dtype for the three MXU matmuls (weights and x/x_ref
               are pre-cast in this wrapper; bf16 recommended on v6e/v7x).
    ew_dtype:  operand dtype for the correlation/assemble elementwise loops
               (bf16 on v6e/v7x for packed-VPU throughput; keep f32 on v5e).
               Softmax, biases, residual and all accumulation stay f32.
    """
    n, c, h, w = x.shape
    hw = h * w
    ci = p['w_theta'].shape[1]
    kw = 2 * d + 1
    # MxCorrelation(K=1) normalizes by #channels; embedded_gaussian scales by
    # 256/sqrt(W).  Both folded into the theta projection (zero runtime cost).
    scale = 256.0 / (w ** 0.5) / float(ci)

    wq_t = (jnp.transpose(p['w_theta']) * scale).astype(mxu_dtype)   # (Ci, C)
    bq = (p['b_theta'] * scale).reshape(ci, 1)                        # f32
    wkv_t = jnp.transpose(
        jnp.concatenate([p['w_phi'], p['w_g']], axis=1)).astype(mxu_dtype)
    bkv = jnp.concatenate([p['b_phi'], p['b_g']]).reshape(2 * ci, 1)
    wo_t = jnp.transpose(p['w_out']).astype(mxu_dtype)                # (C, Ci)
    bo = p['b_out'].reshape(c, 1)

    # Factored displacement-validity mask (row x col), built host-side once.
    pos = jnp.arange(hw, dtype=jnp.int32)
    col = pos % w
    row = pos // w
    col_mask = jnp.stack(
        [((col + dx >= 0) & (col + dx < w)).astype(jnp.float32)
         for dx in range(-d, d + 1)], axis=0)                         # (kw, HW)
    row_mask = jnp.stack(
        [((row + dy >= 0) & (row + dy < h)).astype(jnp.float32)
         for dy in range(-d, d + 1)], axis=0)                         # (kw, HW)

    # Free bitcast to channel-first flat layout; pre-cast MXU operands once.
    x_flat = x.reshape(n, c, hw).astype(mxu_dtype)
    xr_flat = xref.reshape(n, c, hw).astype(mxu_dtype)

    # TODO(synk): at production FPN sizes add a row-band grid axis with a
    # d-row halo (mandatory on v7x 64 MiB VMEM); not needed at these shapes.
    out = pl.pallas_call(
        _make_ca_kernel(d, h, w, ci, mxu_dtype, ew_dtype, _get_roll_sign()),
        out_shape=jax.ShapeDtypeStruct((n, c, hw), jnp.float32),
        grid=(n,),
        in_specs=[
            pl.BlockSpec((1, c, hw), lambda b: (b, 0, 0)),       # x
            pl.BlockSpec((1, c, hw), lambda b: (b, 0, 0)),       # x_ref
            pl.BlockSpec((ci, c), lambda b: (0, 0)),             # w_theta^T * s
            pl.BlockSpec((ci, 1), lambda b: (0, 0)),             # b_theta * s
            pl.BlockSpec((2 * ci, c), lambda b: (0, 0)),         # [w_phi|w_g]^T
            pl.BlockSpec((2 * ci, 1), lambda b: (0, 0)),         # [b_phi|b_g]
            pl.BlockSpec((c, ci), lambda b: (0, 0)),             # w_out^T
            pl.BlockSpec((c, 1), lambda b: (0, 0)),              # b_out
            pl.BlockSpec((kw, hw), lambda b: (0, 0)),            # col mask
            pl.BlockSpec((kw, hw), lambda b: (0, 0)),            # row mask
        ],
        out_specs=pl.BlockSpec((1, c, hw), lambda b: (b, 0, 0)),
        scratch_shapes=[
            pltpu.VMEM((kw, kw, hw), jnp.float32),               # logits/probs
        ],
        compiler_params=pltpu.CompilerParams(
            dimension_semantics=("parallel",)),
    )(x_flat, xr_flat, wq_t, bq, wkv_t, bkv, wo_t, bo, col_mask, row_mask)
    return out.reshape(n, c, h, w)


_LEVEL_TO_BLOCK = (0, 1, 2, 0, 1)   # EmbedCA.forward reuses CA blocks 0/1
_BLOCK_DISP = (6, 4, 2)             # corr_disp of CA blocks 0, 1, 2


def embed_ca_forward(feats, feat_refs, block_params,
                     mxu_dtype=jnp.float32, ew_dtype=jnp.float32):
    outs = []
    for lvl, (x, xr) in enumerate(zip(feats, feat_refs)):
        b = _LEVEL_TO_BLOCK[lvl]
        outs.append(ca_block(x, xr, block_params[b], _BLOCK_DISP[b],
                             mxu_dtype=mxu_dtype, ew_dtype=ew_dtype))
    return outs


# ---------------------------------------------------------------------------
# Deterministic parameter init (shapes from CA.__init__)
# ---------------------------------------------------------------------------
def init_ca_params(key, c, ci, std=0.1):
    ks = jax.random.split(key, 4)

    def wmat(kk, cin, cout):
        return std * jax.random.normal(kk, (cin, cout), jnp.float32)

    return {
        'w_g': wmat(ks[0], c, ci), 'b_g': jnp.zeros((ci,), jnp.float32),
        'w_theta': wmat(ks[1], c, ci), 'b_theta': jnp.zeros((ci,), jnp.float32),
        'w_phi': wmat(ks[2], c, ci), 'b_phi': jnp.zeros((ci,), jnp.float32),
        # torch zero-inits conv_out (output == x); use small normal instead.
        'w_out': wmat(ks[3], ci, c), 'b_out': jnp.zeros((c,), jnp.float32),
    }


# ---------------------------------------------------------------------------
# Pure-JAX reference (mirrors the PyTorch module, NCHW) for verification
# ---------------------------------------------------------------------------
def _ca_reference(x, xr, p, d):
    n, c, h, w = x.shape
    ci = p['w_theta'].shape[1]

    def pw(z, wt, b):
        return (jnp.einsum('co,nchw->nohw', wt, z, precision='highest')
                + b[None, :, None, None])

    theta = pw(x, p['w_theta'], p['b_theta'])
    phi = pw(xr, p['w_phi'], p['b_phi'])
    g = pw(xr, p['w_g'], p['b_g'])
    pad_cfg = ((0, 0), (0, 0), (d, d), (d, d))
    phi_p = jnp.pad(phi, pad_cfg)
    g_p = jnp.pad(g, pad_cfg)
    logits, gs = [], []
    for dy in range(-d, d + 1):
        for dx in range(-d, d + 1):
            ph = phi_p[:, :, dy + d:dy + d + h, dx + d:dx + d + w]
            logits.append(jnp.sum(theta * ph, axis=1) / ci)     # MxCorrelation
            gs.append(g_p[:, :, dy + d:dy + d + h, dx + d:dx + d + w])
    logits = jnp.stack(logits, axis=1) * (256.0 / (w ** 0.5))   # use_scale
    wgt = jax.nn.softmax(logits, axis=1)
    y = sum(wgt[:, i:i + 1] * gs[i] for i in range(len(gs)))    # MxAssemble
    return (x + jnp.einsum('oc,nohw->nchw', p['w_out'], y, precision='highest')
            + p['b_out'][None, :, None, None])


# ---------------------------------------------------------------------------
if __name__ == "__main__":
    key = jax.random.PRNGKey(0)
    C = 16                      # channels (256 in the real module, small here)
    reduction = 2
    Ci = C // reduction
    N = 2

    k_param, k_data = jax.random.split(key)
    block_params = [init_ca_params(k, C, Ci)
                    for k in jax.random.split(k_param, 3)]

    # 5 FPN-like feature levels (NCHW).  Spatial sizes chosen so H*W is a
    # multiple of 128 -> lane-dense blocks / unmasked output stores.
    level_hw = [(16, 16), (16, 16), (8, 16), (8, 16), (8, 16)]
    dkeys = jax.random.split(k_data, 2 * len(level_hw))
    feats = [jax.random.normal(dkeys[2 * i], (N, C, h, w), jnp.float32)
             for i, (h, w) in enumerate(level_hw)]
    feat_refs = [jax.random.normal(dkeys[2 * i + 1], (N, C, h, w), jnp.float32)
                 for i, (h, w) in enumerate(level_hw)]

    # f32 path (v5e-safe default)
    outs_f32 = embed_ca_forward(feats, feat_refs, block_params)
    outs_f32 = [jax.block_until_ready(o) for o in outs_f32]

    # bf16 MXU-operand path: weights and x/x_ref pre-cast in the wrapper,
    # correlation/assemble/softmax stay f32.  (On v6e/v7x additionally pass
    # ew_dtype=jnp.bfloat16 for the packed-VPU elementwise path.)
    outs_bf16 = embed_ca_forward(feats, feat_refs, block_params,
                                 mxu_dtype=jnp.bfloat16)
    outs_bf16 = [jax.block_until_ready(o) for o in outs_bf16]

    # verify against the pure-JAX reference
    for i, (x, xr) in enumerate(zip(feats, feat_refs)):
        b = _LEVEL_TO_BLOCK[i]
        ref = _ca_reference(x, xr, block_params[b], _BLOCK_DISP[b])
        assert outs_f32[i].shape == x.shape
        assert bool(jnp.allclose(outs_f32[i], ref, atol=5e-3, rtol=5e-3)), \
            f"level {i} mismatch (f32 path)"
        assert bool(jnp.allclose(outs_bf16[i], ref, atol=5e-2, rtol=5e-2)), \
            f"level {i} mismatch (bf16 MXU path)"

    print("KERNEL_OK")
</pallas_src>

<mosaic_0001>
module attributes {stable_mosaic.version = 11 : i64} {
  func.func @k(%arg0: memref<8x128xf32, #tpu.memory_space<vmem>>, %arg1: memref<8x128xf32, #tpu.memory_space<vmem>>) attributes {dimension_semantics = [], scalar_prefetch = 0 : i64, scratch_operands = 0 : i64, tpu.core_type = #tpu.core_type<tc>} {
    %c0 = arith.constant 0 : index
    %c0_0 = arith.constant 0 : index
    %0 = vector.load %arg0[%c0, %c0_0] : memref<8x128xf32, #tpu.memory_space<vmem>>, vector<8x128xf32>
    %c1_i32 = arith.constant 1 : i32
    %1 = tpu.dynamic_rotate %0 by %c1_i32 dim 1 : vector<8x128xf32>, i32 -> vector<8x128xf32>
    %c0_1 = arith.constant 0 : index
    %c0_2 = arith.constant 0 : index
    %2 = vector.load %arg1[%c0_1, %c0_2] : memref<8x128xf32, #tpu.memory_space<vmem>>, vector<8x128xf32>
    tpu.vector_store %arg1[%c0_1, %c0_2], %1 {strides = array<i32>} : memref<8x128xf32, #tpu.memory_space<vmem>>, vector<8x128xf32>,
    return
  }
}

</mosaic_0001>

<llo_original>
// kernel: tpu_custom_call.1
$region0: #{tpu_custom_call.1}
  #allocation0 [shape = 'u32[]', space=smem, size = 0x4, offset = 0x4, fixed_abs, tag = 'smem constant byte address 0x4 - core index']
  #allocation1 [shape = 'u32[144,128]{1,0:T(1,128)}', space=vmem, size = 0x12000, scoped, tag = 'internal scratch']
  %s0 = inlined_call_operand.hbm [shape: f32[8,128], index: 0, kind: input, shape index: {}]
  %s1 = inlined_call_operand.hbm [shape: f32[8,128], index: 1, kind: output, shape index: {}]
  %s2 = sld [smem:[#allocation0]]
  $region18: #{tpu_custom_call.1} parent=0
    _
  %s4 = ssub.s32 1, %s2
  %s5 = scalar_select 0, %s4, %s2
  $region1: #{tpu_custom_call.1} parent=0
    #allocation2 [shape = 'u8[4096]{0}', space=vmem, size = 0x1000, scoped, tag = 'input window, operand 0, single buffered']
    #allocation3 [shape = 's32[1]{0}', space=sflag, size = 0x4, scoped, tag = 'scoped memory for tpu_custom_call.1']
    #allocation4 [shape = 's32[1]{0}', space=sflag, size = 0x4, scoped, tag = 'scoped memory for tpu_custom_call.1']
    #allocation5 [shape = 'u8[4096]{0}', space=vmem, size = 0x1000, scoped, tag = 'output window, operand 0, single buffered']
    %6 = vsyncpa [#allocation3], 0
    %7 = vsyncpa [#allocation4], 0
    // Predicated region
    $region2: #{tpu_custom_call.1} parent=1 // pred_check
      _
    $region3: #{tpu_custom_call.1} parent=1 // pred_check_branch
      %9 = sbr.rel (0) target = $region5
    $region4: #{tpu_custom_call.1} parent=1 // pred_region
      %s11 = ssub.s32 128, 128
      %12 = vsyncadd [#allocation3], %s11
      %s14 = sshll.u32 [#allocation2], 4
      %s15 = int_to_ptr.vmem [resolvable:$true] %s14
      %17 = dma.hbm_to_vmem [thread:$0]  %s0, 128, %s15, [#allocation3]
    $region5: #{tpu_custom_call.1} parent=1 // pred_fallthru
      _
    // Predicated region
    $region6: #{tpu_custom_call.1} parent=1 // pred_check
      _
    $region7: #{tpu_custom_call.1} parent=1 // pred_check_branch
      %19 = sbr.rel (0) target = $region9
    $region8: #{tpu_custom_call.1} parent=1 // pred_region
      %20 = dma.done [#allocation3], 128
    $region9: #{tpu_custom_call.1} parent=1 // pred_fallthru
      _
    %v21 = vld [vmem:[#allocation2] sm:$0xff]
    %22 = vrot.lane.b32.xlu0 %v21, 1
    %v23 = vpop.permute.xlu0 %22
    %24 = vst [vmem:[#allocation5] sm:$0xff] %v23
    // Predicated region
    $region10: #{tpu_custom_call.1} parent=1 // pred_check
      _
    $region11: #{tpu_custom_call.1} parent=1 // pred_check_branch
      %26 = sbr.rel (0) target = $region13
    $region12: #{tpu_custom_call.1} parent=1 // pred_region
      %s28 = ssub.s32 128, 128
      %29 = vsyncadd [#allocation4], %s28
      %s31 = sshll.u32 [#allocation5], 4
      %s32 = int_to_ptr.vmem [resolvable:$true] %s31
      %34 = dma.vmem_to_hbm [thread:$0]  %s32, 128, %s1, [#allocation4]
    $region13: #{tpu_custom_call.1} parent=1 // pred_fallthru
      _
    // Predicated region
    $region14: #{tpu_custom_call.1} parent=1 // pred_check
      _
    $region15: #{tpu_custom_call.1} parent=1 // pred_check_branch
      %36 = sbr.rel (0) target = $region17
    $region16: #{tpu_custom_call.1} parent=1 // pred_region
      %37 = dma.done [#allocation4], 128
    $region17: #{tpu_custom_call.1} parent=1 // pred_fallthru
      _
    %38 = vsyncpa [#allocation3], 1
    %39 = vsyncpa [#allocation4], 1

</llo_original>
